<compile_context>
chip_gen: v7x
topology: tpu7x:2x2x1
jax: 0.10.0
libtpu: 0.0.40
codegen_flags: <defaults>
</compile_context>

<pallas_src>
import jax
import jax.numpy as jnp
from jax.experimental import pallas as pl
from jax.experimental.pallas import tpu as pltpu


def _dkt_seq_kernel(state0_ref, x_ref, y_ref, wsi_ref, wh_ref, wp_ref, b_ref,
                    out_ref, loss_ref, xs_sc, loss_acc):
    H = wh_ref.shape[0]          # n_hidden
    I = x_ref.shape[1]           # n_input
    Q = wp_ref.shape[1]          # n_questions
    HI = H + I
    ONES_LANE = HI               # lane holding 1.0 -> folds (bs+bi) into Wsi
    PRED_LANE = HI + 1           # spare lane of the output slab that carries pred
    B = xs_sc.shape[0]

    t = pl.program_id(0)

    @pl.when(t == 0)
    def _init():
        xs_sc[...] = jnp.zeros(xs_sc.shape, jnp.float32)
        xs_sc[:, 0:H] = state0_ref[...]
        xs_sc[:, ONES_LANE:ONES_LANE + 1] = jnp.ones((B, 1), jnp.float32)
        loss_acc[...] = jnp.zeros(loss_acc.shape, jnp.float32)

    # Stream this step's inputX into lanes [H, H+I) of the slab.
    xs_sc[:, H:HI] = x_ref[...]

    # Fused state_transform + input_transform (bias folded via the ones lane),
    # single aligned K=128 MXU pass.
    feat = jnp.dot(xs_sc[...], wsi_ref[...], preferred_element_type=jnp.float32)  # (B, H)
    combined = jnp.tanh(feat)

    # hidden_layer: ReLU -> Linear -> ReLU -> Dropout(identity in eval)
    h1 = jnp.maximum(combined, 0.0)
    hidden = jnp.dot(h1, wh_ref[...], preferred_element_type=jnp.float32) + b_ref[0:1, 0:H]
    hidden = jnp.maximum(hidden, 0.0)

    # prediction_layer: Dropout(identity in eval) -> Linear -> sigmoid
    logits = jnp.dot(hidden, wp_ref[...], preferred_element_type=jnp.float32) + b_ref[1:2, 0:Q]
    pred_output = pl.reciprocal(1.0 + jnp.exp(-logits), approx=True)               # sigmoid

    y = y_ref[:, 0:Q]            # one-hot / mask
    truth = y_ref[:, Q:Q + 1]    # truth packed into the extra lane
    pred = jnp.sum(pred_output * y, axis=1, keepdims=True)                          # (B, 1)

    # binary_cross_entropy(pred, truth, reduction='sum'), torch-style -100 clamp
    log_p = jnp.maximum(jnp.log(pred), -100.0)
    log_1mp = jnp.maximum(jnp.log(1.0 - pred), -100.0)
    loss_acc[...] += jnp.sum(-(truth * log_p + (1.0 - truth) * log_1mp))

    # State carry for next step + packed lane-dense output slab:
    #   lanes 0:H = hidden, lane PRED_LANE = pred
    #   (lanes H:H+I hold this step's inputX and the ones lane; ignored by wrapper)
    xs_sc[:, 0:H] = hidden
    xs_sc[:, PRED_LANE:PRED_LANE + 1] = pred
    out_ref[...] = xs_sc[...]     # one unmasked 128-lane store per step

    @pl.when(t == pl.num_programs(0) - 1)
    def _fin():
        loss_ref[...] = loss_acc[...]


def prepare_params(params):
    """One-time weight prep (call ONCE, outside the step/sequence loop).

    Wsi : (K_PAD, H)  rows [0:H)=Ws.T, [H:H+I)=Wi.T, row H+I = bs+bi (ones-lane
          bias fold), remaining rows zero.  K_PAD is a multiple of 128.
    Wh  : (H, H)   pre-transposed
    Wp  : (H, Q)   pre-transposed
    b   : (2, 128-padded)  row0 lanes[:H]=bh, row1 lanes[:Q]=bp
    """
    H = params["Ws"].shape[0]
    I = params["Wi"].shape[1]
    Q = params["Wp"].shape[0]
    HI = H + I
    k_pad = ((HI + 2 + 127) // 128) * 128          # room for ones lane + pred lane
    wsi = jnp.zeros((k_pad, H), jnp.float32)
    wsi = wsi.at[0:H, :].set(params["Ws"].T)
    wsi = wsi.at[H:HI, :].set(params["Wi"].T)
    wsi = wsi.at[HI, :].set(params["bs"] + params["bi"])
    blane = ((max(H, Q) + 127) // 128) * 128
    b = jnp.zeros((2, blane), jnp.float32)
    b = b.at[0, :H].set(params["bh"])
    b = b.at[1, :Q].set(params["bp"])
    return {"Wsi": wsi, "Wh": params["Wh"].T, "Wp": params["Wp"].T, "b": b}


@jax.jit
def improved_dkt_sequence_forward(state0, inputX_seq, inputY_seq, truth_seq, prepared):
    """T DKT-cell steps in one pallas_call (state_{t+1} = hidden_t).

    Returns (pred (T,B), total loss scalar, hidden (T,B,H))."""
    T, B, I = inputX_seq.shape
    _, H = state0.shape
    Q = prepared["Wp"].shape[1]
    K_PAD = prepared["Wsi"].shape[0]
    BLANE = prepared["b"].shape[1]
    PRED_LANE = H + I + 1

    # Pack truth into a spare lane of inputY (one fewer streamed operand).
    y_ext = jnp.concatenate(
        [inputY_seq.astype(jnp.float32),
         truth_seq.reshape(T, B, 1).astype(jnp.float32)], axis=-1)      # (T, B, Q+1)

    grid_spec = pltpu.PrefetchScalarGridSpec(
        num_scalar_prefetch=0,
        grid=(T,),
        in_specs=[
            pl.BlockSpec((B, H), lambda t: (0, 0)),              # state0 (used at t==0)
            pl.BlockSpec((None, B, I), lambda t: (t, 0, 0)),     # inputX stream
            pl.BlockSpec((None, B, Q + 1), lambda t: (t, 0, 0)), # inputY|truth stream
            pl.BlockSpec((K_PAD, H), lambda t: (0, 0)),          # Wsi  (VMEM resident)
            pl.BlockSpec((H, H), lambda t: (0, 0)),              # Wh   (VMEM resident)
            pl.BlockSpec((H, Q), lambda t: (0, 0)),              # Wp   (VMEM resident)
            pl.BlockSpec((2, BLANE), lambda t: (0, 0)),          # bh/bp packed
        ],
        out_specs=(
            pl.BlockSpec((None, B, K_PAD), lambda t: (t, 0, 0)), # packed hidden|pred slab
            pl.BlockSpec((1, 1), lambda t: (0, 0)),              # total loss
        ),
        scratch_shapes=[
            pltpu.VMEM((B, K_PAD), jnp.float32),                 # state / input slab
            pltpu.VMEM((1, 1), jnp.float32),                     # loss accumulator
        ],
    )

    out_slab, loss = pl.pallas_call(
        _dkt_seq_kernel,
        out_shape=(
            jax.ShapeDtypeStruct((T, B, K_PAD), jnp.float32),
            jax.ShapeDtypeStruct((1, 1), jnp.float32),
        ),
        grid_spec=grid_spec,
        compiler_params=pltpu.CompilerParams(dimension_semantics=("arbitrary",)),
    )(state0, inputX_seq, y_ext,
      prepared["Wsi"], prepared["Wh"], prepared["Wp"], prepared["b"])

    hidden_seq = out_slab[:, :, :H]
    pred_seq = out_slab[:, :, PRED_LANE]
    return pred_seq, loss[0, 0], hidden_seq


def improved_dkt_cell_forward(state, inputX, inputY, truth, prepared):
    """Single-step call with the exact ImprovedDKTCell.forward signature."""
    pred_seq, loss, hidden_seq = improved_dkt_sequence_forward(
        state, inputX[None], inputY[None], truth[None], prepared)
    return pred_seq[0], loss, hidden_seq[0]


def _init_params(key, n_input, n_hidden, n_questions):
    ks = jax.random.split(key, 8)
    s = 0.1
    return {
        "Ws": s * jax.random.normal(ks[0], (n_hidden, n_hidden), jnp.float32),
        "bs": s * jax.random.normal(ks[1], (n_hidden,), jnp.float32),
        "Wi": s * jax.random.normal(ks[2], (n_hidden, n_input), jnp.float32),
        "bi": s * jax.random.normal(ks[3], (n_hidden,), jnp.float32),
        "Wh": s * jax.random.normal(ks[4], (n_hidden, n_hidden), jnp.float32),
        "bh": s * jax.random.normal(ks[5], (n_hidden,), jnp.float32),
        "Wp": s * jax.random.normal(ks[6], (n_questions, n_hidden), jnp.float32),
        "bp": s * jax.random.normal(ks[7], (n_questions,), jnp.float32),
    }


def _reference_sequence(state0, xs, ys, truths, params):
    """Plain-JAX reference: the PyTorch forward stepped over T with state=hidden."""
    def step(state, inp):
        x, y, tr = inp
        sf = state @ params["Ws"].T + params["bs"]
        xf = x @ params["Wi"].T + params["bi"]
        combined = jnp.tanh(sf + xf)
        hidden = jnp.maximum(
            jnp.maximum(combined, 0.0) @ params["Wh"].T + params["bh"], 0.0)
        logits = hidden @ params["Wp"].T + params["bp"]
        pred = jnp.sum(jax.nn.sigmoid(logits) * y, axis=1)
        log_p = jnp.maximum(jnp.log(pred), -100.0)
        log_1mp = jnp.maximum(jnp.log(1.0 - pred), -100.0)
        loss = jnp.sum(-(tr * log_p + (1.0 - tr) * log_1mp))
        return hidden, (pred, loss, hidden)
    _, (preds, losses, hiddens) = jax.lax.scan(step, state0, (xs, ys, truths))
    return preds, jnp.sum(losses), hiddens


if __name__ == "__main__":
    B, n_input, n_hidden, n_questions, T = 8, 16, 32, 64, 8

    key = jax.random.PRNGKey(0)
    k_param, k_state, k_x, k_q, k_truth = jax.random.split(key, 5)

    params = _init_params(k_param, n_input, n_hidden, n_questions)
    prepared = prepare_params(params)          # hoisted, one-time weight prep

    state0 = jax.random.normal(k_state, (B, n_hidden), jnp.float32)
    xs = jax.random.normal(k_x, (T, B, n_input), jnp.float32)
    q_ids = jax.random.randint(k_q, (T, B), 0, n_questions)
    ys = jax.nn.one_hot(q_ids, n_questions, dtype=jnp.float32)
    truths = jax.random.bernoulli(k_truth, 0.5, (T, B)).astype(jnp.float32)

    pred_seq, loss, hidden_seq = improved_dkt_sequence_forward(
        state0, xs, ys, truths, prepared)
    jax.block_until_ready((pred_seq, loss, hidden_seq))

    # sanity check against plain-JAX reference
    pred_r, loss_r, hidden_r = _reference_sequence(state0, xs, ys, truths, params)
    assert jnp.allclose(hidden_seq, hidden_r, atol=1e-3), "hidden mismatch"
    # pred/loss tolerances are loose because the kernel uses the approximate
    # EUP reciprocal (pl.reciprocal(approx=True)) for the sigmoid.
    assert jnp.allclose(pred_seq, pred_r, atol=2e-2), "pred mismatch"
    assert abs(float(loss) - float(loss_r)) <= 0.05 * abs(float(loss_r)) + 0.5, "loss mismatch"

    # single-step call (exact module signature) also works
    p1, l1, h1 = improved_dkt_cell_forward(state0, xs[0], ys[0], truths[0], prepared)
    jax.block_until_ready((p1, l1, h1))
    assert jnp.allclose(h1, hidden_r[0], atol=1e-3), "single-step hidden mismatch"

    print("KERNEL_OK")
</pallas_src>

<mosaic_0001>
module attributes {stable_mosaic.version = 11 : i64} {
  func.func @_dkt_seq_kernel(%arg0: i32, %arg1: memref<8x32xf32, #tpu.memory_space<vmem>>, %arg2: memref<1x8x16xf32, #tpu.memory_space<vmem>>, %arg3: memref<1x8x65xf32, #tpu.memory_space<vmem>>, %arg4: memref<128x32xf32, #tpu.memory_space<vmem>>, %arg5: memref<32x32xf32, #tpu.memory_space<vmem>>, %arg6: memref<32x64xf32, #tpu.memory_space<vmem>>, %arg7: memref<2x128xf32, #tpu.memory_space<vmem>>, %arg8: memref<1x8x128xf32, #tpu.memory_space<vmem>>, %arg9: memref<1x1xf32, #tpu.memory_space<vmem>>, %arg10: memref<8x128xf32, #tpu.memory_space<vmem>>, %arg11: memref<1x1xf32, #tpu.memory_space<vmem>>) attributes {dimension_semantics = [#tpu.dimension_semantics<arbitrary>], iteration_bounds = array<i64: 8>, scalar_prefetch = 0 : i64, scratch_operands = 2 : i64, tpu.core_type = #tpu.core_type<tc>, window_params = [{pipeline_mode = #tpu.pipeline_mode<synchronous>, transform_indices = @transform_0, window_bounds = array<i64: 8, 32>}, {transform_indices = @transform_1, window_bounds = array<i64: 1, 8, 16>}, {transform_indices = @transform_2, window_bounds = array<i64: 1, 8, 65>}, {pipeline_mode = #tpu.pipeline_mode<synchronous>, transform_indices = @transform_3, window_bounds = array<i64: 128, 32>}, {pipeline_mode = #tpu.pipeline_mode<synchronous>, transform_indices = @transform_4, window_bounds = array<i64: 32, 32>}, {pipeline_mode = #tpu.pipeline_mode<synchronous>, transform_indices = @transform_5, window_bounds = array<i64: 32, 64>}, {pipeline_mode = #tpu.pipeline_mode<synchronous>, transform_indices = @transform_6, window_bounds = array<i64: 2, 128>}, {transform_indices = @transform_7, window_bounds = array<i64: 1, 8, 128>}, {pipeline_mode = #tpu.pipeline_mode<synchronous>, transform_indices = @transform_8, window_bounds = array<i64: 1, 1>}]} {
    %c0_i32 = arith.constant 0 : i32
    %0 = arith.cmpi eq, %arg0, %c0_i32 : i32
    %1 = arith.extui %0 : i1 to i32
    %c0_i32_0 = arith.constant 0 : i32
    %2 = arith.cmpi ne, %1, %c0_i32_0 : i32
    scf.if %2 {
      %cst_46 = arith.constant 0.000000e+00 : f32
      %69 = vector.broadcast %cst_46 : f32 to vector<8x128xf32>
      %c0_47 = arith.constant 0 : index
      %c0_48 = arith.constant 0 : index
      %70 = vector.load %arg10[%c0_47, %c0_48] : memref<8x128xf32, #tpu.memory_space<vmem>>, vector<8x128xf32>
      tpu.vector_store %arg10[%c0_47, %c0_48], %69 {strides = array<i32>} : memref<8x128xf32, #tpu.memory_space<vmem>>, vector<8x128xf32>,
      %c0_49 = arith.constant 0 : index
      %c0_50 = arith.constant 0 : index
      %71 = vector.load %arg1[%c0_49, %c0_50] : memref<8x32xf32, #tpu.memory_space<vmem>>, vector<8x32xf32>
      %c0_51 = arith.constant 0 : index
      %c0_52 = arith.constant 0 : index
      %72 = vector.load %arg10[%c0_51, %c0_52] : memref<8x128xf32, #tpu.memory_space<vmem>>, vector<8x32xf32>
      tpu.vector_store %arg10[%c0_51, %c0_52], %71 {strides = array<i32>} : memref<8x128xf32, #tpu.memory_space<vmem>>, vector<8x32xf32>,
      %cst_53 = arith.constant 1.000000e+00 : f32
      %73 = vector.broadcast %cst_53 : f32 to vector<8x1xf32>
      %c0_54 = arith.constant 0 : index
      %c48 = arith.constant 48 : index
      %74 = vector.load %arg10[%c0_54, %c48] : memref<8x128xf32, #tpu.memory_space<vmem>>, vector<8x1xf32>
      tpu.vector_store %arg10[%c0_54, %c48], %73 {strides = array<i32>} : memref<8x128xf32, #tpu.memory_space<vmem>>, vector<8x1xf32>,
      %cst_55 = arith.constant 0.000000e+00 : f32
      %75 = vector.broadcast %cst_55 : f32 to vector<1x1xf32>
      %c0_56 = arith.constant 0 : index
      %c0_57 = arith.constant 0 : index
      %76 = vector.load %arg11[%c0_56, %c0_57] : memref<1x1xf32, #tpu.memory_space<vmem>>, vector<1x1xf32>
      tpu.vector_store %arg11[%c0_56, %c0_57], %75 {strides = array<i32>} : memref<1x1xf32, #tpu.memory_space<vmem>>, vector<1x1xf32>,
    } else {
    }
    %c0 = arith.constant 0 : index
    %c0_1 = arith.constant 0 : index
    %c0_2 = arith.constant 0 : index
    %3 = vector.load %arg2[%c0, %c0_1, %c0_2] : memref<1x8x16xf32, #tpu.memory_space<vmem>>, vector<1x8x16xf32>
    %4 = vector.shape_cast %3 : vector<1x8x16xf32> to vector<8x16xf32>
    %c0_3 = arith.constant 0 : index
    %c32 = arith.constant 32 : index
    %5 = vector.load %arg10[%c0_3, %c32] : memref<8x128xf32, #tpu.memory_space<vmem>>, vector<8x16xf32>
    tpu.vector_store %arg10[%c0_3, %c32], %4 {strides = array<i32>} : memref<8x128xf32, #tpu.memory_space<vmem>>, vector<8x16xf32>,
    %c0_4 = arith.constant 0 : index
    %c0_5 = arith.constant 0 : index
    %6 = vector.load %arg10[%c0_4, %c0_5] : memref<8x128xf32, #tpu.memory_space<vmem>>, vector<8x128xf32>
    %c0_6 = arith.constant 0 : index
    %c0_7 = arith.constant 0 : index
    %7 = vector.load %arg4[%c0_6, %c0_7] : memref<128x32xf32, #tpu.memory_space<vmem>>, vector<128x32xf32>
    %cst = arith.constant dense<0.000000e+00> : vector<8x32xf32>
    %8 = tpu.matmul %6, %7, %cst {dimension_numbers = #tpu.dot_dimension_numbers<[1], [0], [0], [1], [0, 0, 1, 1], [], []>} : vector<8x128xf32>, vector<128x32xf32>, vector<8x32xf32> -> vector<8x32xf32>
    %9 = math.tanh %8 : vector<8x32xf32>
    %cst_8 = arith.constant 0.000000e+00 : f32
    %10 = vector.broadcast %cst_8 : f32 to vector<8x32xf32>
    %11 = arith.maximumf %9, %10 : vector<8x32xf32>
    %c0_9 = arith.constant 0 : index
    %c0_10 = arith.constant 0 : index
    %12 = vector.load %arg5[%c0_9, %c0_10] : memref<32x32xf32, #tpu.memory_space<vmem>>, vector<32x32xf32>
    %cst_11 = arith.constant dense<0.000000e+00> : vector<8x32xf32>
    %13 = tpu.matmul %11, %12, %cst_11 {dimension_numbers = #tpu.dot_dimension_numbers<[1], [0], [0], [1], [0, 0, 1, 1], [], []>} : vector<8x32xf32>, vector<32x32xf32>, vector<8x32xf32> -> vector<8x32xf32>
    %c0_12 = arith.constant 0 : index
    %c0_13 = arith.constant 0 : index
    %14 = vector.load %arg7[%c0_12, %c0_13] : memref<2x128xf32, #tpu.memory_space<vmem>>, vector<1x32xf32>
    %15 = vector.broadcast %14 : vector<1x32xf32> to vector<8x32xf32>
    %16 = arith.addf %13, %15 : vector<8x32xf32>
    %cst_14 = arith.constant 0.000000e+00 : f32
    %17 = vector.broadcast %cst_14 : f32 to vector<8x32xf32>
    %18 = arith.maximumf %16, %17 : vector<8x32xf32>
    %c0_15 = arith.constant 0 : index
    %c0_16 = arith.constant 0 : index
    %19 = vector.load %arg6[%c0_15, %c0_16] : memref<32x64xf32, #tpu.memory_space<vmem>>, vector<32x64xf32>
    %cst_17 = arith.constant dense<0.000000e+00> : vector<8x64xf32>
    %20 = tpu.matmul %18, %19, %cst_17 {dimension_numbers = #tpu.dot_dimension_numbers<[1], [0], [0], [1], [0, 0, 1, 1], [], []>} : vector<8x32xf32>, vector<32x64xf32>, vector<8x64xf32> -> vector<8x64xf32>
    %c1 = arith.constant 1 : index
    %c0_18 = arith.constant 0 : index
    %21 = vector.load %arg7[%c1, %c0_18] : memref<2x128xf32, #tpu.memory_space<vmem>>, vector<1x64xf32>
    %22 = vector.broadcast %21 : vector<1x64xf32> to vector<8x64xf32>
    %23 = arith.addf %20, %22 : vector<8x64xf32>
    %cst_19 = arith.constant 0.000000e+00 : f32
    %24 = vector.broadcast %cst_19 : f32 to vector<8x64xf32>
    %25 = arith.subf %24, %23 : vector<8x64xf32>
    %26 = math.exp %25 : vector<8x64xf32>
    %cst_20 = arith.constant 1.000000e+00 : f32
    %27 = vector.broadcast %cst_20 : f32 to vector<8x64xf32>
    %28 = arith.addf %27, %26 : vector<8x64xf32>
    %29 = tpu.reciprocal %28 {approx = true} : vector<8x64xf32> -> vector<8x64xf32>
    %c0_21 = arith.constant 0 : index
    %c0_22 = arith.constant 0 : index
    %c0_23 = arith.constant 0 : index
    %30 = vector.load %arg3[%c0_21, %c0_22, %c0_23] : memref<1x8x65xf32, #tpu.memory_space<vmem>>, vector<1x8x64xf32>
    %31 = vector.shape_cast %30 : vector<1x8x64xf32> to vector<8x64xf32>
    %c0_24 = arith.constant 0 : index
    %c0_25 = arith.constant 0 : index
    %c64 = arith.constant 64 : index
    %32 = vector.load %arg3[%c0_24, %c0_25, %c64] : memref<1x8x65xf32, #tpu.memory_space<vmem>>, vector<1x8x1xf32>
    %33 = vector.shape_cast %32 : vector<1x8x1xf32> to vector<8x1xf32>
    %34 = arith.mulf %29, %31 : vector<8x64xf32>
    %cst_26 = arith.constant dense<0.000000e+00> : vector<8xf32>
    %35 = vector.multi_reduction <add>, %34, %cst_26 [1] : vector<8x64xf32> to vector<8xf32>
    %36 = vector.shape_cast %35 : vector<8xf32> to vector<8x1xf32>
    %37 = math.log %36 : vector<8x1xf32>
    %cst_27 = arith.constant -1.000000e+02 : f32
    %38 = vector.broadcast %cst_27 : f32 to vector<8x1xf32>
    %39 = arith.maximumf %37, %38 : vector<8x1xf32>
    %cst_28 = arith.constant 1.000000e+00 : f32
    %40 = vector.broadcast %cst_28 : f32 to vector<8x1xf32>
    %41 = arith.subf %40, %36 : vector<8x1xf32>
    %42 = math.log %41 : vector<8x1xf32>
    %cst_29 = arith.constant -1.000000e+02 : f32
    %43 = vector.broadcast %cst_29 : f32 to vector<8x1xf32>
    %44 = arith.maximumf %42, %43 : vector<8x1xf32>
    %c0_30 = arith.constant 0 : index
    %c0_31 = arith.constant 0 : index
    %45 = vector.load %arg11[%c0_30, %c0_31] : memref<1x1xf32, #tpu.memory_space<vmem>>, vector<1x1xf32>
    %46 = arith.mulf %33, %39 : vector<8x1xf32>
    %cst_32 = arith.constant 1.000000e+00 : f32
    %47 = vector.broadcast %cst_32 : f32 to vector<8x1xf32>
    %48 = arith.subf %47, %33 : vector<8x1xf32>
    %49 = arith.mulf %48, %44 : vector<8x1xf32>
    %50 = arith.addf %46, %49 : vector<8x1xf32>
    %cst_33 = arith.constant 0.000000e+00 : f32
    %51 = vector.broadcast %cst_33 : f32 to vector<8x1xf32>
    %52 = arith.subf %51, %50 : vector<8x1xf32>
    %53 = vector.shape_cast %52 : vector<8x1xf32> to vector<1x8x1xf32>
    %cst_34 = arith.constant dense<0.000000e+00> : vector<1xf32>
    %54 = vector.multi_reduction <add>, %53, %cst_34 [1, 2] : vector<1x8x1xf32> to vector<1xf32>
    %55 = vector.shape_cast %54 : vector<1xf32> to vector<1x1x1xf32>
    %56 = vector.extract %55[0, 0, 0] : f32 from vector<1x1x1xf32>
    %57 = vector.broadcast %56 : f32 to vector<1x1xf32>
    %58 = arith.addf %45, %57 : vector<1x1xf32>
    %c0_35 = arith.constant 0 : index
    %c0_36 = arith.constant 0 : index
    %59 = vector.load %arg11[%c0_35, %c0_36] : memref<1x1xf32, #tpu.memory_space<vmem>>, vector<1x1xf32>
    tpu.vector_store %arg11[%c0_35, %c0_36], %58 {strides = array<i32>} : memref<1x1xf32, #tpu.memory_space<vmem>>, vector<1x1xf32>,
    %c0_37 = arith.constant 0 : index
    %c0_38 = arith.constant 0 : index
    %60 = vector.load %arg10[%c0_37, %c0_38] : memref<8x128xf32, #tpu.memory_space<vmem>>, vector<8x32xf32>
    tpu.vector_store %arg10[%c0_37, %c0_38], %18 {strides = array<i32>} : memref<8x128xf32, #tpu.memory_space<vmem>>, vector<8x32xf32>,
    %c0_39 = arith.constant 0 : index
    %c49 = arith.constant 49 : index
    %61 = vector.load %arg10[%c0_39, %c49] : memref<8x128xf32, #tpu.memory_space<vmem>>, vector<8x1xf32>
    tpu.vector_store %arg10[%c0_39, %c49], %36 {strides = array<i32>} : memref<8x128xf32, #tpu.memory_space<vmem>>, vector<8x1xf32>,
    %c0_40 = arith.constant 0 : index
    %c0_41 = arith.constant 0 : index
    %62 = vector.load %arg10[%c0_40, %c0_41] : memref<8x128xf32, #tpu.memory_space<vmem>>, vector<8x128xf32>
    %c0_42 = arith.constant 0 : index
    %c0_43 = arith.constant 0 : index
    %c0_44 = arith.constant 0 : index
    %63 = vector.load %arg8[%c0_42, %c0_43, %c0_44] : memref<1x8x128xf32, #tpu.memory_space<vmem>>, vector<1x8x128xf32>
    %64 = vector.shape_cast %63 : vector<1x8x128xf32> to vector<8x128xf32>
    %65 = vector.shape_cast %62 : vector<8x128xf32> to vector<1x8x128xf32>
    tpu.vector_store %arg8[%c0_42, %c0_43, %c0_44], %65 {strides = array<i32>} : memref<1x8x128xf32, #tpu.memory_space<vmem>>, vector<1x8x128xf32>,
    %c7_i32 = arith.constant 7 : i32
    %66 = arith.cmpi eq, %arg0, %c7_i32 : i32
    %67 = arith.extui %66 : i1 to i32
    %c0_i32_45 = arith.constant 0 : i32
    %68 = arith.cmpi ne, %67, %c0_i32_45 : i32
    scf.if %68 {
      %c0_46 = arith.constant 0 : index
      %c0_47 = arith.constant 0 : index
      %69 = vector.load %arg11[%c0_46, %c0_47] : memref<1x1xf32, #tpu.memory_space<vmem>>, vector<1x1xf32>
      %c0_48 = arith.constant 0 : index
      %c0_49 = arith.constant 0 : index
      %70 = vector.load %arg9[%c0_48, %c0_49] : memref<1x1xf32, #tpu.memory_space<vmem>>, vector<1x1xf32>
      tpu.vector_store %arg9[%c0_48, %c0_49], %69 {strides = array<i32>} : memref<1x1xf32, #tpu.memory_space<vmem>>, vector<1x1xf32>,
    } else {
    }
    return
  }
  func.func @transform_0(%arg0: i32) -> (i32, i32) {
    %c0_i32 = arith.constant 0 : i32
    %c0_i32_0 = arith.constant 0 : i32
    %c0_i32_1 = arith.constant 0 : i32
    return %c0_i32, %c0_i32_0 : i32, i32
  }
  func.func @transform_1(%arg0: i32) -> (i32, i32, i32) {
    %c0_i32 = arith.constant 0 : i32
    %c0_i32_0 = arith.constant 0 : i32
    %c0_i32_1 = arith.constant 0 : i32
    return %arg0, %c0_i32, %c0_i32_0 : i32, i32, i32
  }
  func.func @transform_2(%arg0: i32) -> (i32, i32, i32) {
    %c0_i32 = arith.constant 0 : i32
    %c0_i32_0 = arith.constant 0 : i32
    %c0_i32_1 = arith.constant 0 : i32
    return %arg0, %c0_i32, %c0_i32_0 : i32, i32, i32
  }
  func.func @transform_3(%arg0: i32) -> (i32, i32) {
    %c0_i32 = arith.constant 0 : i32
    %c0_i32_0 = arith.constant 0 : i32
    %c0_i32_1 = arith.constant 0 : i32
    return %c0_i32, %c0_i32_0 : i32, i32
  }
  func.func @transform_4(%arg0: i32) -> (i32, i32) {
    %c0_i32 = arith.constant 0 : i32
    %c0_i32_0 = arith.constant 0 : i32
    %c0_i32_1 = arith.constant 0 : i32
    return %c0_i32, %c0_i32_0 : i32, i32
  }
  func.func @transform_5(%arg0: i32) -> (i32, i32) {
    %c0_i32 = arith.constant 0 : i32
    %c0_i32_0 = arith.constant 0 : i32
    %c0_i32_1 = arith.constant 0 : i32
    return %c0_i32, %c0_i32_0 : i32, i32
  }
  func.func @transform_6(%arg0: i32) -> (i32, i32) {
    %c0_i32 = arith.constant 0 : i32
    %c0_i32_0 = arith.constant 0 : i32
    %c0_i32_1 = arith.constant 0 : i32
    return %c0_i32, %c0_i32_0 : i32, i32
  }
  func.func @transform_7(%arg0: i32) -> (i32, i32, i32) {
    %c0_i32 = arith.constant 0 : i32
    %c0_i32_0 = arith.constant 0 : i32
    %c0_i32_1 = arith.constant 0 : i32
    return %arg0, %c0_i32, %c0_i32_0 : i32, i32, i32
  }
  func.func @transform_8(%arg0: i32) -> (i32, i32) {
    %c0_i32 = arith.constant 0 : i32
    %c0_i32_0 = arith.constant 0 : i32
    %c0_i32_1 = arith.constant 0 : i32
    return %c0_i32, %c0_i32_0 : i32, i32
  }
}

</mosaic_0001>

<llo_original>
// kernel: improved_dkt_sequence_forward.1
$region0: #{improved_dkt_sequence_forward.1}
  #allocation0 [shape = 'u32[]', space=smem, size = 0x4, offset = 0x4, fixed_abs, tag = 'smem constant byte address 0x4 - core index']
  #allocation1 [shape = 'u32[144,128]{1,0:T(1,128)}', space=vmem, size = 0x12000, scoped, tag = 'internal scratch']
  #allocation2 [shape = 'f32[8,128]{1,0:T(8,128)}', space=vmem, size = 0x1000, scoped, tag = 'scratch operand']
  #allocation3 [shape = 'f32[1,1]{1,0:T(1,128)}', space=vmem, size = 0x200, scoped, tag = 'scratch operand']
  %s0 = inlined_call_operand.vmem [shape: f32[8,32], index: 0, kind: input, shape index: {}]
  %s1 = inlined_call_operand.vmem [shape: f32[8,8,16], index: 1, kind: input, shape index: {}]
  %s2 = inlined_call_operand.vmem [shape: f32[8,8,65], index: 2, kind: input, shape index: {}]
  %s3 = inlined_call_operand.vmem [shape: f32[128,32], index: 3, kind: input, shape index: {}]
  %s4 = inlined_call_operand.vmem [shape: f32[32,32], index: 4, kind: input, shape index: {}]
  %s5 = inlined_call_operand.vmem [shape: f32[32,64], index: 5, kind: input, shape index: {}]
  %s6 = inlined_call_operand.vmem [shape: f32[2,128], index: 6, kind: input, shape index: {}]
  %s7 = inlined_call_operand.vmem [shape: f32[8,8,128], index: 7, kind: output, shape index: {0}]
  %s8 = inlined_call_operand.hbm [shape: f32[1,1], index: 8, kind: output, shape index: {1}]
  %9 = xla_tuple %s7, %s8
  %s10 = sld [smem:[#allocation0]]
  $region77: #{improved_dkt_sequence_forward.1} parent=0
    _
  %s12 = ssub.s32 1, %s10
  %s13 = scalar_select 0, %s12, %s10
  $region1: #{improved_dkt_sequence_forward.1} parent=0
    #allocation4 [shape = 'u8[512]{0}', space=vmem, size = 0x400, scoped, tag = 'output window, operand 1, single buffered']
    #allocation5 [shape = 's32[2]{0}', space=sflag, size = 0x8, scoped, tag = 'scoped memory for improved_dkt_sequence_forward.1']
    %14 = vsyncpa [#allocation5], 0
    loop: start=0, step=1, limit=10
    $region2: #{improved_dkt_sequence_forward.1} parent=1 // loop_pre_header
      _
    $region3: #{improved_dkt_sequence_forward.1} parent=1 // loop_header
      %s16 = sphi 0, %s20
      %p17 = scmp.ge.s32.totalorder %s16, 10
      %s24 = sphi 0, %s24
      %s26 = sphi 0, %s24
      %s27 = sphi 0, %s26
      %s41 = sphi 0, %s27
      %s47 = sphi 0, %s49
      %s50 = sphi 0, %s47
      %s51 = sphi 0, %s50
      %s67 = sphi 0, %s51
      %s73 = sphi 0, %s75
      %s76 = sphi 0, %s73
      %s77 = sphi 0, %s76
      %s93 = sphi 0, %s77
      %s97 = sphi 0, %s97
      %s99 = sphi 0, %s97
      %s100 = sphi 0, %s99
      %s114 = sphi 0, %s100
      %s118 = sphi 0, %s118
      %s120 = sphi 0, %s118
      %s121 = sphi 0, %s120
      %s135 = sphi 0, %s121
      %s139 = sphi 0, %s139
      %s141 = sphi 0, %s139
      %s142 = sphi 0, %s141
      %s156 = sphi 0, %s142
      %s160 = sphi 0, %s160
      %s162 = sphi 0, %s160
      %s163 = sphi 0, %s162
      %s177 = sphi 0, %s163
      %s183 = sphi 0, %s185
      %s186 = sphi 0, %s183
      %s187 = sphi 0, %s186
      %s203 = sphi 0, %s187
      %s207 = sphi 0, %s207
      %s209 = sphi 0, %s207
      %s210 = sphi 0, %s209
      %s224 = sphi 0, %s210
    $region4: #{improved_dkt_sequence_forward.1} parent=1 // loop_header_branch
      %19 = sbr.rel (%p17) target = $region8
    $region5: #{improved_dkt_sequence_forward.1} parent=1 // loop_body
      %s21 = ssub.s32 %s16, 1
      %s22 = ssub.s32 %s16, 2
      %s23 = sadd.s32 %s16, 1
      %s25 = sadd.s32 %s24, 1
      %p28 = scmp.eq.s32.totalorder %s16, 7
      %p29 = scmp.ne.s32.totalorder %s24, %s26
      %p30 = scmp.eq.s32.totalorder %s16, 0
      %p31 = por %p29, %p30
      %p32 = scmp.ne.s32.totalorder %s24, %s26
      %p33 = scmp.eq.s32.totalorder %s21, 7
      %p34 = por %p32, %p33
      %p35 = scmp.ne.s32.totalorder %s26, %s27
      %p36 = scmp.eq.s32.totalorder %s21, 0
      %p37 = por %p35, %p36
      %p38 = scmp.ne.s32.totalorder %s26, %s27
      %p39 = scmp.eq.s32.totalorder %s22, 7
      %p40 = por %p38, %p39
      %p42 = scmp.ne.s32.totalorder %s27, %s41
      %p43 = scmp.eq.s32.totalorder %s22, 0
      %p44 = por %p42, %p43
      %s45 = ssub.s32 %s16, %s23
      %p46 = scmp.eq.s32.totalorder %s45, 0
      %s48 = sadd.s32 %s47, 1
      %s49 = scalar_select %p46, %s47, %s48
      %p52 = pneg %p46
      %p53 = scmp.eq.s32.totalorder %s16, 7
      %p54 = por %p52, %p53
      %p55 = scmp.ne.s32.totalorder %s47, %s50
      %p56 = scmp.eq.s32.totalorder %s16, 0
      %p57 = por %p55, %p56
      %p58 = scmp.ne.s32.totalorder %s47, %s50
      %p59 = scmp.eq.s32.totalorder %s21, 7
      %p60 = por %p58, %p59
      %p61 = scmp.ne.s32.totalorder %s50, %s51
      %p62 = scmp.eq.s32.totalorder %s21, 0
      %p63 = por %p61, %p62
      %p64 = scmp.ne.s32.totalorder %s50, %s51
      %p65 = scmp.eq.s32.totalorder %s22, 7
      %p66 = por %p64, %p65
      %p68 = scmp.ne.s32.totalorder %s51, %s67
      %p69 = scmp.eq.s32.totalorder %s22, 0
      %p70 = por %p68, %p69
      %s71 = ssub.s32 %s16, %s23
      %p72 = scmp.eq.s32.totalorder %s71, 0
      %s74 = sadd.s32 %s73, 1
      %s75 = scalar_select %p72, %s73, %s74
      %p78 = pneg %p72
      %p79 = scmp.eq.s32.totalorder %s16, 7
      %p80 = por %p78, %p79
      %p81 = scmp.ne.s32.totalorder %s73, %s76
      %p82 = scmp.eq.s32.totalorder %s16, 0
      %p83 = por %p81, %p82
      %p84 = scmp.ne.s32.totalorder %s73, %s76
      %p85 = scmp.eq.s32.totalorder %s21, 7
      %p86 = por %p84, %p85
      %p87 = scmp.ne.s32.totalorder %s76, %s77
      %p88 = scmp.eq.s32.totalorder %s21, 0
      %p89 = por %p87, %p88
      %p90 = scmp.ne.s32.totalorder %s76, %s77
      %p91 = scmp.eq.s32.totalorder %s22, 7
      %p92 = por %p90, %p91
      %p94 = scmp.ne.s32.totalorder %s77, %s93
      %p95 = scmp.eq.s32.totalorder %s22, 0
      %p96 = por %p94, %p95
      %s98 = sadd.s32 %s97, 1
      %p101 = scmp.eq.s32.totalorder %s16, 7
      %p102 = scmp.ne.s32.totalorder %s97, %s99
      %p103 = scmp.eq.s32.totalorder %s16, 0
      %p104 = por %p102, %p103
      %p105 = scmp.ne.s32.totalorder %s97, %s99
      %p106 = scmp.eq.s32.totalorder %s21, 7
      %p107 = por %p105, %p106
      %p108 = scmp.ne.s32.totalorder %s99, %s100
      %p109 = scmp.eq.s32.totalorder %s21, 0
      %p110 = por %p108, %p109
      %p111 = scmp.ne.s32.totalorder %s99, %s100
      %p112 = scmp.eq.s32.totalorder %s22, 7
      %p113 = por %p111, %p112
      %p115 = scmp.ne.s32.totalorder %s100, %s114
      %p116 = scmp.eq.s32.totalorder %s22, 0
      %p117 = por %p115, %p116
      %s119 = sadd.s32 %s118, 1
      %p122 = scmp.eq.s32.totalorder %s16, 7
      %p123 = scmp.ne.s32.totalorder %s118, %s120
      %p124 = scmp.eq.s32.totalorder %s16, 0
      %p125 = por %p123, %p124
      %p126 = scmp.ne.s32.totalorder %s118, %s120
      %p127 = scmp.eq.s32.totalorder %s21, 7
      %p128 = por %p126, %p127
      %p129 = scmp.ne.s32.totalorder %s120, %s121
      %p130 = scmp.eq.s32.totalorder %s21, 0
      %p131 = por %p129, %p130
      %p132 = scmp.ne.s32.totalorder %s120, %s121
      %p133 = scmp.eq.s32.totalorder %s22, 7
      %p134 = por %p132, %p133
      %p136 = scmp.ne.s32.totalorder %s121, %s135
      %p137 = scmp.eq.s32.totalorder %s22, 0
      %p138 = por %p136, %p137
      %s140 = sadd.s32 %s139, 1
      %p143 = scmp.eq.s32.totalorder %s16, 7
      %p144 = scmp.ne.s32.totalorder %s139, %s141
      %p145 = scmp.eq.s32.totalorder %s16, 0
      %p146 = por %p144, %p145
      %p147 = scmp.ne.s32.totalorder %s139, %s141
      %p148 = scmp.eq.s32.totalorder %s21, 7
      %p149 = por %p147, %p148
      %p150 = scmp.ne.s32.totalorder %s141, %s142
      %p151 = scmp.eq.s32.totalorder %s21, 0
      %p152 = por %p150, %p151
      %p153 = scmp.ne.s32.totalorder %s141, %s142
      %p154 = scmp.eq.s32.totalorder %s22, 7
      %p155 = por %p153, %p154
      %p157 = scmp.ne.s32.totalorder %s142, %s156
      %p158 = scmp.eq.s32.totalorder %s22, 0
      %p159 = por %p157, %p158
      %s161 = sadd.s32 %s160, 1
      %p164 = scmp.eq.s32.totalorder %s16, 7
      %p165 = scmp.ne.s32.totalorder %s160, %s162
      %p166 = scmp.eq.s32.totalorder %s16, 0
      %p167 = por %p165, %p166
      %p168 = scmp.ne.s32.totalorder %s160, %s162
      %p169 = scmp.eq.s32.totalorder %s21, 7
      %p170 = por %p168, %p169
      %p171 = scmp.ne.s32.totalorder %s162, %s163
      %p172 = scmp.eq.s32.totalorder %s21, 0
      %p173 = por %p171, %p172
      %p174 = scmp.ne.s32.totalorder %s162, %s163
      %p175 = scmp.eq.s32.totalorder %s22, 7
      %p176 = por %p174, %p175
      %p178 = scmp.ne.s32.totalorder %s163, %s177
      %p179 = scmp.eq.s32.totalorder %s22, 0
      %p180 = por %p178, %p179
      %s181 = ssub.s32 %s16, %s23
      %p182 = scmp.eq.s32.totalorder %s181, 0
      %s184 = sadd.s32 %s183, 1
      %s185 = scalar_select %p182, %s183, %s184
      %p188 = pneg %p182
      %p189 = scmp.eq.s32.totalorder %s16, 7
      %p190 = por %p188, %p189
      %p191 = scmp.ne.s32.totalorder %s183, %s186
      %p192 = scmp.eq.s32.totalorder %s16, 0
      %p193 = por %p191, %p192
      %p194 = scmp.ne.s32.totalorder %s183, %s186
      %p195 = scmp.eq.s32.totalorder %s21, 7
      %p196 = por %p194, %p195
      %p197 = scmp.ne.s32.totalorder %s186, %s187
      %p198 = scmp.eq.s32.totalorder %s21, 0
      %p199 = por %p197, %p198
      %p200 = scmp.ne.s32.totalorder %s186, %s187
      %p201 = scmp.eq.s32.totalorder %s22, 7
      %p202 = por %p200, %p201
      %p204 = scmp.ne.s32.totalorder %s187, %s203
      %p205 = scmp.eq.s32.totalorder %s22, 0
      %p206 = por %p204, %p205
      %s208 = sadd.s32 %s207, 1
      %p211 = scmp.eq.s32.totalorder %s16, 7
      %p212 = scmp.ne.s32.totalorder %s207, %s209
      %p213 = scmp.eq.s32.totalorder %s16, 0
      %p214 = por %p212, %p213
      %p215 = scmp.ne.s32.totalorder %s207, %s209
      %p216 = scmp.eq.s32.totalorder %s21, 7
      %p217 = por %p215, %p216
      %p218 = scmp.ne.s32.totalorder %s209, %s210
      %p219 = scmp.eq.s32.totalorder %s21, 0
      %p220 = por %p218, %p219
      %p221 = scmp.ne.s32.totalorder %s209, %s210
      %p222 = scmp.eq.s32.totalorder %s22, 7
      %p223 = por %p221, %p222
      %p225 = scmp.ne.s32.totalorder %s210, %s224
      %p226 = scmp.eq.s32.totalorder %s22, 0
      %p227 = por %p225, %p226
      %p228 = scmp.le.s32.totalorder 1, %s16
      %p229 = scmp.lt.s32.totalorder %s16, 9
      %p230 = pnand %p228, %p229
      %p231 = pneg %p230
      // Predicated region
      $region9: #{improved_dkt_sequence_forward.1} parent=5 // pred_check
        _
      $region10: #{improved_dkt_sequence_forward.1} parent=5 // pred_check_branch
        %233 = sbr.rel (%p230) target = $region12
      $region11: #{improved_dkt_sequence_forward.1} parent=5 // pred_region
        %s234 = ssub.s32 %s16, 1
        // Predicated region
        $region13: #{improved_dkt_sequence_forward.1} parent=11 // pred_check
          %p235 = pneg %p37
        $region14: #{improved_dkt_sequence_forward.1} parent=11 // pred_check_branch
          %237 = sbr.rel (%p235) target = $region16
        $region15: #{improved_dkt_sequence_forward.1} parent=11 // pred_region
          _
        $region16: #{improved_dkt_sequence_forward.1} parent=11 // pred_fallthru
          _
        // Predicated region
        $region17: #{improved_dkt_sequence_forward.1} parent=11 // pred_check
          %p238 = pneg %p110
        $region18: #{improved_dkt_sequence_forward.1} parent=11 // pred_check_branch
          %240 = sbr.rel (%p238) target = $region20
        $region19: #{improved_dkt_sequence_forward.1} parent=11 // pred_region
          _
        $region20: #{improved_dkt_sequence_forward.1} parent=11 // pred_fallthru
          _
        // Predicated region
        $region21: #{improved_dkt_sequence_forward.1} parent=11 // pred_check
          %p241 = pneg %p131
        $region22: #{improved_dkt_sequence_forward.1} parent=11 // pred_check_branch
          %243 = sbr.rel (%p241) target = $region24
        $region23: #{improved_dkt_sequence_forward.1} parent=11 // pred_region
          _
        $region24: #{improved_dkt_sequence_forward.1} parent=11 // pred_fallthru
          _
        // Predicated region
        $region25: #{improved_dkt_sequence_forward.1} parent=11 // pred_check
          %p244 = pneg %p152
        $region26: #{improved_dkt_sequence_forward.1} parent=11 // pred_check_branch
          %246 = sbr.rel (%p244) target = $region28
        $region27: #{improved_dkt_sequence_forward.1} parent=11 // pred_region
          _
        $region28: #{improved_dkt_sequence_forward.1} parent=11 // pred_fallthru
          _
        // Predicated region
        $region29: #{improved_dkt_sequence_forward.1} parent=11 // pred_check
          %p247 = pneg %p173
        $region30: #{improved_dkt_sequence_forward.1} parent=11 // pred_check_branch
          %249 = sbr.rel (%p247) target = $region32
        $region31: #{improved_dkt_sequence_forward.1} parent=11 // pred_region
          _
        $region32: #{improved_dkt_sequence_forward.1} parent=11 // pred_fallthru
          _
      $region12: #{improved_dkt_sequence_forward.1} parent=5 // pred_fallthru
        _
      %p250 = scmp.lt.s32.totalorder %s16, 8
      // Predicated region
      $region33: #{improved_dkt_sequence_forward.1} parent=5 // pred_check
        %p251 = pneg %p250
      $region34: #{improved_dkt_sequence_forward.1} parent=5 // pred_check_branch
        %253 = sbr.rel (%p251) target = $region36
      $region35: #{improved_dkt_sequence_forward.1} parent=5 // pred_region
        // Predicated region
        $region37: #{improved_dkt_sequence_forward.1} parent=35 // pred_check
          %p254 = pneg %p57
        $region38: #{improved_dkt_sequence_forward.1} parent=35 // pred_check_branch
          %256 = sbr.rel (%p254) target = $region40
        $region39: #{improved_dkt_sequence_forward.1} parent=35 // pred_region
          %p257 = scmp.lt.s32.totalorder %s16, 7
          %s258 = scalar_select %p257, %s16, 7
          %s259 = smul.addr %s258, 8
          %s260 = scalar_lea.vmem %s1, %s259
        $region40: #{improved_dkt_sequence_forward.1} parent=35 // pred_fallthru
          _
        // Predicated region
        $region41: #{improved_dkt_sequence_forward.1} parent=35 // pred_check
          %p261 = pneg %p83
        $region42: #{improved_dkt_sequence_forward.1} parent=35 // pred_check_branch
          %263 = sbr.rel (%p261) target = $region44
        $region43: #{improved_dkt_sequence_forward.1} parent=35 // pred_region
          %p264 = scmp.lt.s32.totalorder %s16, 7
          %s265 = scalar_select %p264, %s16, 7
          %s266 = smul.addr %s265, 8
          %s267 = scalar_lea.vmem %s2, %s266
        $region44: #{improved_dkt_sequence_forward.1} parent=35 // pred_fallthru
          _
      $region36: #{improved_dkt_sequence_forward.1} parent=5 // pred_fallthru
        _
      %p268 = scmp.le.s32.totalorder 1, %s16
      %p269 = scmp.lt.s32.totalorder %s16, 9
      %p270 = pnand %p268, %p269
      %p271 = pneg %p270
      // Predicated region
      $region45: #{improved_dkt_sequence_forward.1} parent=5 // pred_check
        _
      $region46: #{improved_dkt_sequence_forward.1} parent=5 // pred_check_branch
        %273 = sbr.rel (%p270) target = $region48
      $region47: #{improved_dkt_sequence_forward.1} parent=5 // pred_region
        %s274 = ssub.s32 %s16, 1
        %p275 = pneg %p37
        %p276 = pneg %p34
        %p277 = scmp.lt.s32.totalorder %s21, 7
        %s278 = scalar_select %p277, %s21, 7
        %s279 = smul.addr %s278, 8
        %s280 = scalar_lea.vmem %s1, %s279
        %p281 = pneg %p63
        %p282 = pneg %p60
        %p283 = scmp.lt.s32.totalorder %s21, 7
        %s284 = scalar_select %p283, %s21, 7
        %s285 = smul.addr %s284, 8
        %s286 = scalar_lea.vmem %s2, %s285
        %p287 = pneg %p89
        %p288 = pneg %p86
        %p289 = pneg %p110
        %p290 = pneg %p107
        %p291 = pneg %p131
        %p292 = pneg %p128
        %p293 = pneg %p152
        %p294 = pneg %p149
        %p295 = pneg %p173
        %p296 = pneg %p170
        %p297 = pneg %p199
        %p298 = pneg %p196
        %p299 = scmp.lt.s32.totalorder %s21, 7
        %s300 = scalar_select %p299, %s21, 7
        %s301 = smul.addr %s300, 8
        %s302 = scalar_lea.vmem %s7, %s301
        %p303 = pneg %p220
        %p304 = pneg %p217
        %p305 = scmp.lt.s32.totalorder %s21, 7
        %s306 = scalar_select %p305, %s21, 7
        %s307 = smul.addr %s306, 8
        %s308 = scalar_lea.vmem %s1, %s307
        %p309 = scmp.lt.s32.totalorder %s21, 7
        %s310 = scalar_select %p309, %s21, 7
        %s311 = smul.addr %s310, 8
        %s312 = scalar_lea.vmem %s2, %s311
        %p313 = scmp.lt.s32.totalorder %s21, 7
        %s314 = scalar_select %p313, %s21, 7
        %s315 = smul.addr %s314, 8
        %s316 = scalar_lea.vmem %s7, %s315
        %p317 = scmp.eq.s32.totalorder %s21, 0
        // Predicated region
        $region49: #{improved_dkt_sequence_forward.1} parent=47 // pred_check
          %p318 = pneg %p317
        $region50: #{improved_dkt_sequence_forward.1} parent=47 // pred_check_branch
          %320 = sbr.rel (%p318) target = $region52
        $region51: #{improved_dkt_sequence_forward.1} parent=47 // pred_region
          %321 = vst [vmem:[#allocation2] sm:$0xff] 0.0
          %v322 = vld [vmem:[%s0] sm:$0xff]
          %vm323 = vcmask 261120
          %324 = vst.msk [vmem:[#allocation2] sm:$0xff] %vm323, %v322
          %vm325 = vcmask 400768
          %326 = vst.msk [vmem:[#allocation2] sm:$0xff] %vm325, 1.0
          %vm327 = vcmask 0
          %328 = vst.msk [vmem:[#allocation3] sm:$0x1] %vm327, 0.0
        $region52: #{improved_dkt_sequence_forward.1} parent=47 // pred_fallthru
          _
        %v329 = vld [vmem:[%s308] sm:$0xff]
        %331 = vrot.lane.b32.xlu0 %v329, 32
        %v332 = vpop.permute.xlu0 %331
        %vm334 = vcmask 392448
        %335 = vst.msk [vmem:[#allocation2] sm:$0xff] %vm334, %v332
        %v336 = vld [vmem:[#allocation2] sm:$0xff]
        %v337 = vld [vmem:[%s3] sm:$0xff]
        %v338 = vld [vmem:[%s3 + $0x8] sm:$0xff]
        %v339 = vld [vmem:[%s3 + $0x10] sm:$0xff]
        %v340 = vld [vmem:[%s3 + $0x18] sm:$0xff]
        %v341 = vld [vmem:[%s3 + $0x20] sm:$0xff]
        %v342 = vld [vmem:[%s3 + $0x28] sm:$0xff]
        %v343 = vld [vmem:[%s3 + $0x30] sm:$0xff]
        %v344 = vld [vmem:[%s3 + $0x38] sm:$0xff]
        %v345 = vld [vmem:[%s3 + $0x40] sm:$0xff]
        %v346 = vld [vmem:[%s3 + $0x48] sm:$0xff]
        %v347 = vld [vmem:[%s3 + $0x50] sm:$0xff]
        %v348 = vld [vmem:[%s3 + $0x58] sm:$0xff]
        %v349 = vld [vmem:[%s3 + $0x60] sm:$0xff]
        %v350 = vld [vmem:[%s3 + $0x68] sm:$0xff]
        %v351 = vld [vmem:[%s3 + $0x70] sm:$0xff]
        %v352 = vld [vmem:[%s3 + $0x78] sm:$0xff]
        %353 = vmatprep.subr.mxu0 0.0
        %354 = vmatpush1.msra.mxu0 %v337
        %355 = vmatprep.subr.mxu0 0.0
        %356 = vmatpush1.msra.mxu0 %v338
        %357 = vmatprep.subr.mxu0 0.0
        %358 = vmatpush1.msra.mxu0 %v339
        %359 = vmatprep.subr.mxu0 0.0
        %360 = vmatpush1.msra.mxu0 %v340
        %361 = vmatprep.subr.mxu0 0.0
        %362 = vmatpush1.msra.mxu0 %v341
        %363 = vmatprep.subr.mxu0 0.0
        %364 = vmatpush1.msra.mxu0 %v342
        %365 = vmatprep.subr.mxu0 0.0
        %366 = vmatpush1.msra.mxu0 %v343
        %367 = vmatprep.subr.mxu0 0.0
        %368 = vmatpush1.msra.mxu0 %v344
        %369 = vmatprep.subr.mxu0 0.0
        %370 = vmatpush1.msra.mxu0 %v345
        %371 = vmatprep.subr.mxu0 0.0
        %372 = vmatpush1.msra.mxu0 %v346
        %373 = vmatprep.subr.mxu0 0.0
        %374 = vmatpush1.msra.mxu0 %v347
        %375 = vmatprep.subr.mxu0 0.0
        %376 = vmatpush1.msra.mxu0 %v348
        %377 = vmatprep.subr.mxu0 0.0
        %378 = vmatpush1.msra.mxu0 %v349
        %379 = vmatprep.subr.mxu0 0.0
        %380 = vmatpush1.msra.mxu0 %v350
        %381 = vmatprep.subr.mxu0 0.0
        %382 = vmatpush1.msra.mxu0 %v351
        %383 = vmatprep.subr.mxu0 0.0
        %384 = vmatpush1.msra.mxu0 %v352
        %385 = vmatprep.subr.mxu0 0.0
        %386 = vmatpush1.msra.mxu0 0.0
        %387 = vmatprep.subr.mxu0 0.0
        %388 = vmatpush1.msra.mxu0 0.0
        %389 = vmatprep.subr.mxu0 0.0
        %390 = vmatpush1.msra.mxu0 0.0
        %391 = vmatprep.subr.mxu0 0.0
        %392 = vmatpush1.msra.mxu0 0.0
        %393 = vmatprep.subr.mxu0 0.0
        %394 = vmatpush1.msra.mxu0 0.0
        %395 = vmatprep.subr.mxu0 0.0
        %396 = vmatpush1.msra.mxu0 0.0
        %397 = vmatprep.subr.mxu0 0.0
        %398 = vmatpush1.msra.mxu0 0.0
        %399 = vmatprep.subr.mxu0 0.0
        %400 = vmatpush1.msra.mxu0 0.0
        %401 = vmatprep.subr.mxu0 0.0
        %402 = vmatpush1.msra.mxu0 0.0
        %403 = vmatprep.subr.mxu0 0.0
        %404 = vmatpush1.msra.mxu0 0.0
        %405 = vmatprep.subr.mxu0 0.0
        %406 = vmatpush1.msra.mxu0 0.0
        %407 = vmatprep.subr.mxu0 0.0
        %408 = vmatpush1.msra.mxu0 0.0
        %409 = vmatprep.subr.mxu0 0.0
        %410 = vmatpush1.msra.mxu0 0.0
        %411 = vmatprep.subr.mxu0 0.0
        %412 = vmatpush1.msra.mxu0 0.0
        %413 = vmatprep.subr.mxu0 0.0
        %414 = vmatpush1.msra.mxu0 0.0
        %415 = vmatprep.subr.mxu0 0.0
        %416 = vmatpush1.msra.mxu0 0.0
        %417 = vmatprep.mubr.f32.mxu0 0.0
        %418 = vmatmul.mubr.f32.gmra.mrb[0].mxu0 %v336
        %v419 = vpop.f32.mrb[0].mxu0
        %v420 = vadd.f32 0.0, %v419
        %v421 = vpop.f32.mrb[0].mxu0
        %422 = vdwg.mxu0
        %v423 = vtanh.pop %v420
        %v424 = vmax.f32 %v423, 0.0
        %v425 = vld [vmem:[%s4] sm:$0xff]
        %v426 = vld [vmem:[%s4 + $0x8] sm:$0xff]
        %v427 = vld [vmem:[%s4 + $0x10] sm:$0xff]
        %v428 = vld [vmem:[%s4 + $0x18] sm:$0xff]
        %v429 = vld [vmem:[%s6] sm:$0x1]
        %v430 = vlaneseq
        %v431 = vshrl.u32 %v430, 7
        %v432 = vsub.s32 0, %v431
        %v433 = vrot.slane %v429, %v432
        %vm434 = vcmask 261120
        %v436 = vsel %vm434, %v424, 0
        %438 = vmatprep.subr.mxu0 0.0
        %439 = vmatpush1.msra.mxu0 %v425
        %440 = vmatprep.subr.mxu0 0.0
        %441 = vmatpush1.msra.mxu0 %v426
        %442 = vmatprep.subr.mxu0 0.0
        %443 = vmatpush1.msra.mxu0 %v427
        %444 = vmatprep.subr.mxu0 0.0
        %445 = vmatpush1.msra.mxu0 %v428
        %446 = vmatprep.subr.mxu0 0.0
        %447 = vmatpush1.msra.mxu0 0.0
        %448 = vmatprep.subr.mxu0 0.0
        %449 = vmatpush1.msra.mxu0 0.0
        %450 = vmatprep.subr.mxu0 0.0
        %451 = vmatpush1.msra.mxu0 0.0
        %452 = vmatprep.subr.mxu0 0.0
        %453 = vmatpush1.msra.mxu0 0.0
        %454 = vmatprep.subr.mxu0 0.0
        %455 = vmatpush1.msra.mxu0 0.0
        %456 = vmatprep.subr.mxu0 0.0
        %457 = vmatpush1.msra.mxu0 0.0
        %458 = vmatprep.subr.mxu0 0.0
        %459 = vmatpush1.msra.mxu0 0.0
        %460 = vmatprep.subr.mxu0 0.0
        %461 = vmatpush1.msra.mxu0 0.0
        %462 = vmatprep.subr.mxu0 0.0
        %463 = vmatpush1.msra.mxu0 0.0
        %464 = vmatprep.subr.mxu0 0.0
        %465 = vmatpush1.msra.mxu0 0.0
        %466 = vmatprep.subr.mxu0 0.0
        %467 = vmatpush1.msra.mxu0 0.0
        %468 = vmatprep.subr.mxu0 0.0
        %469 = vmatpush1.msra.mxu0 0.0
        %470 = vmatprep.subr.mxu0 0.0
        %471 = vmatpush1.msra.mxu0 0.0
        %472 = vmatprep.subr.mxu0 0.0
        %473 = vmatpush1.msra.mxu0 0.0
        %474 = vmatprep.subr.mxu0 0.0
        %475 = vmatpush1.msra.mxu0 0.0
        %476 = vmatprep.subr.mxu0 0.0
        %477 = vmatpush1.msra.mxu0 0.0
        %478 = vmatprep.subr.mxu0 0.0
        %479 = vmatpush1.msra.mxu0 0.0
        %480 = vmatprep.subr.mxu0 0.0
        %481 = vmatpush1.msra.mxu0 0.0
        %482 = vmatprep.subr.mxu0 0.0
        %483 = vmatpush1.msra.mxu0 0.0
        %484 = vmatprep.subr.mxu0 0.0
        %485 = vmatpush1.msra.mxu0 0.0
        %486 = vmatprep.subr.mxu0 0.0
        %487 = vmatpush1.msra.mxu0 0.0
        %488 = vmatprep.subr.mxu0 0.0
        %489 = vmatpush1.msra.mxu0 0.0
        %490 = vmatprep.subr.mxu0 0.0
        %491 = vmatpush1.msra.mxu0 0.0
        %492 = vmatprep.subr.mxu0 0.0
        %493 = vmatpush1.msra.mxu0 0.0
        %494 = vmatprep.subr.mxu0 0.0
        %495 = vmatpush1.msra.mxu0 0.0
        %496 = vmatprep.subr.mxu0 0.0
        %497 = vmatpush1.msra.mxu0 0.0
        %498 = vmatprep.subr.mxu0 0.0
        %499 = vmatpush1.msra.mxu0 0.0
        %500 = vmatprep.subr.mxu0 0.0
        %501 = vmatpush1.msra.mxu0 0.0
        %502 = vmatprep.mubr.f32.mxu0 0.0
        %503 = vmatmul.mubr.f32.gmra.mrb[0].mxu0 %v436
        %v504 = vpop.f32.mrb[0].mxu0
        %v505 = vadd.f32 %v433, %v504
        %v506 = vpop.f32.mrb[0].mxu0
        %507 = vdwg.mxu0
        %v508 = vmax.f32 %v505, 0.0
        %v509 = vld [vmem:[%s5] sm:$0xff]
        %v510 = vld [vmem:[%s5 + $0x8] sm:$0xff]
        %v511 = vld [vmem:[%s5 + $0x10] sm:$0xff]
        %v512 = vld [vmem:[%s5 + $0x18] sm:$0xff]
        %v513 = vld [vmem:[%s6 + $0x1] sm:$0x1]
        %v514 = vlaneseq
        %v515 = vshrl.u32 %v514, 7
        %v516 = vsub.s32 0, %v515
        %v517 = vrot.slane %v513, %v516
        %v519 = vsel %vm434, %v508, 0
        %521 = vmatprep.subr.mxu0 0.0
        %522 = vmatpush1.msra.mxu0 %v509
        %523 = vmatprep.subr.mxu0 0.0
        %524 = vmatpush1.msra.mxu0 %v510
        %525 = vmatprep.subr.mxu0 0.0
        %526 = vmatpush1.msra.mxu0 %v511
        %527 = vmatprep.subr.mxu0 0.0
        %528 = vmatpush1.msra.mxu0 %v512
        %529 = vmatprep.subr.mxu0 0.0
        %530 = vmatpush1.msra.mxu0 0.0
        %531 = vmatprep.subr.mxu0 0.0
        %532 = vmatpush1.msra.mxu0 0.0
        %533 = vmatprep.subr.mxu0 0.0
        %534 = vmatpush1.msra.mxu0 0.0
        %535 = vmatprep.subr.mxu0 0.0
        %536 = vmatpush1.msra.mxu0 0.0
        %537 = vmatprep.subr.mxu0 0.0
        %538 = vmatpush1.msra.mxu0 0.0
        %539 = vmatprep.subr.mxu0 0.0
        %540 = vmatpush1.msra.mxu0 0.0
        %541 = vmatprep.subr.mxu0 0.0
        %542 = vmatpush1.msra.mxu0 0.0
        %543 = vmatprep.subr.mxu0 0.0
        %544 = vmatpush1.msra.mxu0 0.0
        %545 = vmatprep.subr.mxu0 0.0
        %546 = vmatpush1.msra.mxu0 0.0
        %547 = vmatprep.subr.mxu0 0.0
        %548 = vmatpush1.msra.mxu0 0.0
        %549 = vmatprep.subr.mxu0 0.0
        %550 = vmatpush1.msra.mxu0 0.0
        %551 = vmatprep.subr.mxu0 0.0
        %552 = vmatpush1.msra.mxu0 0.0
        %553 = vmatprep.subr.mxu0 0.0
        %554 = vmatpush1.msra.mxu0 0.0
        %555 = vmatprep.subr.mxu0 0.0
        %556 = vmatpush1.msra.mxu0 0.0
        %557 = vmatprep.subr.mxu0 0.0
        %558 = vmatpush1.msra.mxu0 0.0
        %559 = vmatprep.subr.mxu0 0.0
        %560 = vmatpush1.msra.mxu0 0.0
        %561 = vmatprep.subr.mxu0 0.0
        %562 = vmatpush1.msra.mxu0 0.0
        %563 = vmatprep.subr.mxu0 0.0
        %564 = vmatpush1.msra.mxu0 0.0
        %565 = vmatprep.subr.mxu0 0.0
        %566 = vmatpush1.msra.mxu0 0.0
        %567 = vmatprep.subr.mxu0 0.0
        %568 = vmatpush1.msra.mxu0 0.0
        %569 = vmatprep.subr.mxu0 0.0
        %570 = vmatpush1.msra.mxu0 0.0
        %571 = vmatprep.subr.mxu0 0.0
        %572 = vmatpush1.msra.mxu0 0.0
        %573 = vmatprep.subr.mxu0 0.0
        %574 = vmatpush1.msra.mxu0 0.0
        %575 = vmatprep.subr.mxu0 0.0
        %576 = vmatpush1.msra.mxu0 0.0
        %577 = vmatprep.subr.mxu0 0.0
        %578 = vmatpush1.msra.mxu0 0.0
        %579 = vmatprep.subr.mxu0 0.0
        %580 = vmatpush1.msra.mxu0 0.0
        %581 = vmatprep.subr.mxu0 0.0
        %582 = vmatpush1.msra.mxu0 0.0
        %583 = vmatprep.subr.mxu0 0.0
        %584 = vmatpush1.msra.mxu0 0.0
        %585 = vmatprep.mubr.f32.mxu0 0.0
        %586 = vmatmul.mubr.f32.gmra.mrb[0].mxu0 %v519
        %v587 = vpop.f32.mrb[0].mxu0
        %v588 = vadd.f32 %v517, %v587
        %v589 = vpop.f32.mrb[0].mxu0
        %590 = vdwg.mxu0
        %v591 = vsub.f32 0.0, %v588
        %v592 = vmul.f32 %v591, 1.442695
        %v593 = vpow.pop %v592
        %v594 = vadd.f32 %v593, 1.0
        %v595 = vrcp.pop %v594
        %v596 = vld [vmem:[%s312] sm:$0xff]
        %v597 = vmul.f32 %v595, %v596
        %vm598 = vcmask 523264
        %v599 = vsel %vm598, %v597, 0.0
        %600 = vadd.xlane.f32.xlu0 %v599
        %v601 = vpop.xlane.xlu0 %600
        %v602 = vlog2.pop %v601
        %v603 = vmul.f32 %v602, 0.6931472
        %v604 = vmax.f32 %v603, -100.0
        %v605 = vsub.f32 1.0, %v601
        %v606 = vlog2.pop %v605
        %v607 = vmul.f32 %v606, 0.6931472
        %v608 = vmax.f32 %v607, -100.0
        %v609 = vld [vmem:[#allocation3] sm:$0x1]
        %v610 = vmul.f32 %v596, %v604
        %v611 = vsub.f32 1.0, %v596
        %v612 = vmul.f32 %v611, %v608
        %v613 = vadd.f32 %v610, %v612
        %v614 = vsub.f32 0.0, %v613
        %616 = vrot.lane.b32.xlu0 %v614, 64
        %v617 = vpop.permute.xlu0 %616
        %vm619 = vcmask 7168
        %v620 = vsel %vm619, %v617, 0.0
        %621 = vadd.xlane.f32.xlu0 %v620
        %v622 = vpop.xlane.xlu0 %621
        %v623 = vrot.slane %v622, 4
        %v624 = vadd.f32 %v622, %v623
        %v625 = vrot.slane %v624, 2
        %v626 = vadd.f32 %v624, %v625
        %v627 = vrot.slane %v626, 1
        %v628 = vadd.f32 %v626, %v627
        %s629 = vtos %v628
        %v630 = vstv %s629
        %v631 = vadd.f32 %v609, %v630
        %vm632 = vcmask 0
        %633 = vst.msk [vmem:[#allocation3] sm:$0x1] %vm632, %v631
        %634 = vst.msk [vmem:[#allocation2] sm:$0xff] %vm434, %v508
        %vm635 = vcmask 408968
        %636 = vst.msk [vmem:[#allocation2] sm:$0xff] %vm635, %v601
        %v637 = vld [vmem:[#allocation2] sm:$0xff]
        %638 = vst [vmem:[%s316] sm:$0xff] %v637
        %p639 = scmp.eq.s32.totalorder %s21, 7
        // Predicated region
        $region53: #{improved_dkt_sequence_forward.1} parent=47 // pred_check
          %p640 = pneg %p639
        $region54: #{improved_dkt_sequence_forward.1} parent=47 // pred_check_branch
          %642 = sbr.rel (%p640) target = $region56
        $region55: #{improved_dkt_sequence_forward.1} parent=47 // pred_region
          %v643 = vld [vmem:[#allocation3] sm:$0x1]
          %644 = vst.msk [vmem:[#allocation4] sm:$0x1] %vm632, %v643
        $region56: #{improved_dkt_sequence_forward.1} parent=47 // pred_fallthru
          _
        %p645 = scmp.lt.s32.totalorder %s21, 7
        %s646 = scalar_select %p645, %s21, 7
        %s647 = smul.addr %s646, 8
        %s648 = scalar_lea.vmem %s7, %s647
        // Predicated region
        $region57: #{improved_dkt_sequence_forward.1} parent=47 // pred_check
          %p649 = pneg %p196
        $region58: #{improved_dkt_sequence_forward.1} parent=47 // pred_check_branch
          %651 = sbr.rel (%p649) target = $region60
        $region59: #{improved_dkt_sequence_forward.1} parent=47 // pred_region
          _
        $region60: #{improved_dkt_sequence_forward.1} parent=47 // pred_fallthru
          _
        // Predicated region
        $region61: #{improved_dkt_sequence_forward.1} parent=47 // pred_check
          %p652 = pneg %p217
        $region62: #{improved_dkt_sequence_forward.1} parent=47 // pred_check_branch
          %654 = sbr.rel (%p652) target = $region64
        $region63: #{improved_dkt_sequence_forward.1} parent=47 // pred_region
          %s656 = ssub.s32 16, 16
          %657 = vsyncadd [#allocation5], %s656
          %s659 = sshll.u32 [#allocation4], 4
          %s660 = int_to_ptr.vmem [resolvable:$true] %s659
          %662 = dma.vmem_to_hbm [thread:$0]  %s660, 16, %s8, [#allocation5]
        $region64: #{improved_dkt_sequence_forward.1} parent=47 // pred_fallthru
          _
        // Predicated region
        $region65: #{improved_dkt_sequence_forward.1} parent=47 // pred_check
          %p663 = pneg %p217
        $region66: #{improved_dkt_sequence_forward.1} parent=47 // pred_check_branch
          %665 = sbr.rel (%p663) target = $region68
        $region67: #{improved_dkt_sequence_forward.1} parent=47 // pred_region
          %666 = dma.done [#allocation5], 16
        $region68: #{improved_dkt_sequence_forward.1} parent=47 // pred_fallthru
          _
      $region48: #{improved_dkt_sequence_forward.1} parent=5 // pred_fallthru
        _
      %p667 = scmp.le.s32.totalorder 2, %s16
      // Predicated region
      $region69: #{improved_dkt_sequence_forward.1} parent=5 // pred_check
        %p668 = pneg %p667
      $region70: #{improved_dkt_sequence_forward.1} parent=5 // pred_check_branch
        %670 = sbr.rel (%p668) target = $region72
      $region71: #{improved_dkt_sequence_forward.1} parent=5 // pred_region
        %s671 = ssub.s32 %s16, 2
        // Predicated region
        $region73: #{improved_dkt_sequence_forward.1} parent=71 // pred_check
          %p672 = pneg %p202
        $region74: #{improved_dkt_sequence_forward.1} parent=71 // pred_check_branch
          %674 = sbr.rel (%p672) target = $region76
        $region75: #{improved_dkt_sequence_forward.1} parent=71 // pred_region
          %p675 = scmp.lt.s32.totalorder %s22, 7
          %s676 = scalar_select %p675, %s22, 7
          %s677 = smul.addr %s676, 8
          %s678 = scalar_lea.vmem %s7, %s677
        $region76: #{improved_dkt_sequence_forward.1} parent=71 // pred_fallthru
          _
      $region72: #{improved_dkt_sequence_forward.1} parent=5 // pred_fallthru
        _
    $region6: #{improved_dkt_sequence_forward.1} parent=1 // loop_footer
      %s20 = sadd.s32 1, %s16
    $region7: #{improved_dkt_sequence_forward.1} parent=1 // loop_footer_branch
      %15 = sbr.rel target = $region3
    $region8: #{improved_dkt_sequence_forward.1} parent=1 // loop_exit
      _
    %679 = vsyncpa [#allocation5], 1
    %s680 = scalar_lea.sflag [#allocation5], 1
    %681 = vsyncpa %s680, 1

</llo_original>
